<compile_context>
chip_gen: v7x
topology: tpu7x:2x2x1
jax: 0.10.0
libtpu: 0.0.40
codegen_flags: <defaults>
</compile_context>

<pallas_src>
import jax
import jax.numpy as jnp
from jax.experimental import pallas as pl
from jax.experimental.pallas import tpu as pltpu


def _inputs_adjusted_kernel(x1_ref, x2_ref, x3_ref, w_ref, b_ref, o_ref):
    # x_i refs: (Ci, T) spatial tile of one image; w_ref: (C_out, C_total);
    # b_ref: (C_out, 1); o_ref: (C_out, T).
    # Fused "cat(dim=1)": join the channel groups in VMEM along the sublane
    # axis -- the concatenated tensor never touches HBM.
    x_cat = jnp.concatenate([x1_ref[...], x2_ref[...], x3_ref[...]], axis=0)
    # One MXU matmul with K = C1 + C2 + C3 (instead of 3 small dots + 2 adds).
    acc = jnp.dot(w_ref[...], x_cat, preferred_element_type=jnp.float32)
    acc = acc + b_ref[...]                     # (C_out, 1) broadcasts over lanes
    o_ref[...] = jnp.maximum(acc, 0.0).astype(o_ref.dtype)


def _pick_hw_tile(hw, max_tile=2048):
    """Largest legal spatial tile: full extent when small, otherwise a big
    multiple of 128 (double-buffered tiles stay far below v7x's 64 MiB VMEM)."""
    if hw <= max_tile or hw % 128 != 0:
        return hw                              # full-extent block is always legal
    return (max_tile // 128) * 128             # lane-dense tile; tail is masked


def inputs_adjusted_forward(x1, x2, x3, w, b, *, hw_tile=None):
    """x1/x2/x3: (N, Ci, H, W) float32.  w: (C_out, C1+C2+C3).  b: (C_out,)."""
    n, c1, h, wd = x1.shape
    c2 = x2.shape[1]
    c3 = x3.shape[1]
    c_total = c1 + c2 + c3
    c_out = w.shape[0]
    hw = h * wd

    if hw_tile is None:
        hw_tile = _pick_hw_tile(hw)
    n_hw = pl.cdiv(hw, hw_tile)

    # NCHW -> (N, C, H*W): pure reshapes, no transposes / extra HBM passes.
    x1_r = x1.reshape(n, c1, hw)
    x2_r = x2.reshape(n, c2, hw)
    x3_r = x3.reshape(n, c3, hw)
    b2d = b.reshape(c_out, 1)

    out = pl.pallas_call(
        _inputs_adjusted_kernel,
        out_shape=jax.ShapeDtypeStruct((n, c_out, hw), jnp.float32),
        grid=(n, n_hw),
        in_specs=[
            pl.BlockSpec((None, c1, hw_tile), lambda nb, jb: (nb, 0, jb)),
            pl.BlockSpec((None, c2, hw_tile), lambda nb, jb: (nb, 0, jb)),
            pl.BlockSpec((None, c3, hw_tile), lambda nb, jb: (nb, 0, jb)),
            # Grid-invariant operands (constant index_map, block == full array).
            pl.BlockSpec((c_out, c_total), lambda nb, jb: (0, 0)),
            pl.BlockSpec((c_out, 1), lambda nb, jb: (0, 0)),
        ],
        out_specs=pl.BlockSpec((None, c_out, hw_tile),
                               lambda nb, jb: (nb, 0, jb)),
        compiler_params=pltpu.CompilerParams(
            # No cross-step accumulation -> both grid axes fully parallel
            # (megacore on v5e/v6e, 2 TensorCores on v7x).
            dimension_semantics=("parallel", "parallel"),
            # Generous but v7x-safe scoped VMEM budget.
            vmem_limit_bytes=32 * 1024 * 1024,
        ),
    )(x1_r, x2_r, x3_r, w, b2d)

    # (N, C_out, H*W) -> NCHW: again a pure reshape.
    return out.reshape(n, c_out, h, wd)


def _reference(x1, x2, x3, w, b):
    x = jnp.concatenate([x1, x2, x3], axis=1)          # cat along dim=1 (NCHW)
    y = jnp.einsum('oc,nchw->nohw', w, x) + b[None, :, None, None]
    return jnp.maximum(y, 0.0)


if __name__ == "__main__":
    key = jax.random.PRNGKey(0)
    k1, k2, k3, kw, kb = jax.random.split(key, 5)

    N, C1, C2, C3, H, W = 2, 4, 4, 4, 16, 16
    C_OUT = 8

    x1 = jax.random.normal(k1, (N, C1, H, W), dtype=jnp.float32)
    x2 = jax.random.normal(k2, (N, C2, H, W), dtype=jnp.float32)
    x3 = jax.random.normal(k3, (N, C3, H, W), dtype=jnp.float32)

    c_total = C1 + C2 + C3
    w = jax.random.normal(kw, (C_OUT, c_total), dtype=jnp.float32) * 0.1
    b = jax.random.normal(kb, (C_OUT,), dtype=jnp.float32) * 0.1

    out = inputs_adjusted_forward(x1, x2, x3, w, b)
    out = jax.block_until_ready(out)

    ref = _reference(x1, x2, x3, w, b)
    assert out.shape == (N, C_OUT, H, W)
    assert jnp.allclose(out, ref, atol=1e-4, rtol=1e-4)

    print("KERNEL_OK")
</pallas_src>

<mosaic_0001>
module attributes {stable_mosaic.version = 11 : i64} {
  func.func @_inputs_adjusted_kernel(%arg0: i32, %arg1: i32, %arg2: memref<1x4x256xf32, #tpu.memory_space<vmem>>, %arg3: memref<1x4x256xf32, #tpu.memory_space<vmem>>, %arg4: memref<1x4x256xf32, #tpu.memory_space<vmem>>, %arg5: memref<8x12xf32, #tpu.memory_space<vmem>>, %arg6: memref<8x1xf32, #tpu.memory_space<vmem>>, %arg7: memref<1x8x256xf32, #tpu.memory_space<vmem>>) attributes {dimension_semantics = [#tpu.dimension_semantics<parallel>, #tpu.dimension_semantics<parallel>], iteration_bounds = array<i64: 2, 1>, scalar_prefetch = 0 : i64, scratch_operands = 0 : i64, tpu.core_type = #tpu.core_type<tc>, window_params = [{transform_indices = @transform_0, window_bounds = array<i64: 1, 4, 256>}, {transform_indices = @transform_1, window_bounds = array<i64: 1, 4, 256>}, {transform_indices = @transform_2, window_bounds = array<i64: 1, 4, 256>}, {pipeline_mode = #tpu.pipeline_mode<synchronous>, transform_indices = @transform_3, window_bounds = array<i64: 8, 12>}, {pipeline_mode = #tpu.pipeline_mode<synchronous>, transform_indices = @transform_4, window_bounds = array<i64: 8, 1>}, {transform_indices = @transform_5, window_bounds = array<i64: 1, 8, 256>}]} {
    %c0 = arith.constant 0 : index
    %c0_0 = arith.constant 0 : index
    %c0_1 = arith.constant 0 : index
    %0 = vector.load %arg2[%c0, %c0_0, %c0_1] : memref<1x4x256xf32, #tpu.memory_space<vmem>>, vector<1x4x256xf32>
    %1 = vector.shape_cast %0 : vector<1x4x256xf32> to vector<4x256xf32>
    %c0_2 = arith.constant 0 : index
    %c0_3 = arith.constant 0 : index
    %c0_4 = arith.constant 0 : index
    %2 = vector.load %arg3[%c0_2, %c0_3, %c0_4] : memref<1x4x256xf32, #tpu.memory_space<vmem>>, vector<1x4x256xf32>
    %3 = vector.shape_cast %2 : vector<1x4x256xf32> to vector<4x256xf32>
    %c0_5 = arith.constant 0 : index
    %c0_6 = arith.constant 0 : index
    %c0_7 = arith.constant 0 : index
    %4 = vector.load %arg4[%c0_5, %c0_6, %c0_7] : memref<1x4x256xf32, #tpu.memory_space<vmem>>, vector<1x4x256xf32>
    %5 = vector.shape_cast %4 : vector<1x4x256xf32> to vector<4x256xf32>
    %6 = tpu.concatenate %1, %3, %5 in 0 : vector<4x256xf32>, vector<4x256xf32>, vector<4x256xf32> -> vector<12x256xf32>
    %c0_8 = arith.constant 0 : index
    %c0_9 = arith.constant 0 : index
    %7 = vector.load %arg5[%c0_8, %c0_9] : memref<8x12xf32, #tpu.memory_space<vmem>>, vector<8x12xf32>
    %cst = arith.constant dense<0.000000e+00> : vector<8x256xf32>
    %8 = tpu.matmul %7, %6, %cst {dimension_numbers = #tpu.dot_dimension_numbers<[1], [0], [0], [1], [0, 0, 1, 1], [], []>} : vector<8x12xf32>, vector<12x256xf32>, vector<8x256xf32> -> vector<8x256xf32>
    %c0_10 = arith.constant 0 : index
    %c0_11 = arith.constant 0 : index
    %9 = vector.load %arg6[%c0_10, %c0_11] : memref<8x1xf32, #tpu.memory_space<vmem>>, vector<8x1xf32>
    %10 = vector.broadcast %9 : vector<8x1xf32> to vector<8x256xf32>
    %11 = arith.addf %8, %10 : vector<8x256xf32>
    %cst_12 = arith.constant 0.000000e+00 : f32
    %12 = vector.broadcast %cst_12 : f32 to vector<8x256xf32>
    %13 = arith.maximumf %11, %12 : vector<8x256xf32>
    %c0_13 = arith.constant 0 : index
    %c0_14 = arith.constant 0 : index
    %c0_15 = arith.constant 0 : index
    %14 = vector.load %arg7[%c0_13, %c0_14, %c0_15] : memref<1x8x256xf32, #tpu.memory_space<vmem>>, vector<1x8x256xf32>
    %15 = vector.shape_cast %14 : vector<1x8x256xf32> to vector<8x256xf32>
    %16 = vector.shape_cast %13 : vector<8x256xf32> to vector<1x8x256xf32>
    tpu.vector_store %arg7[%c0_13, %c0_14, %c0_15], %16 {strides = array<i32>} : memref<1x8x256xf32, #tpu.memory_space<vmem>>, vector<1x8x256xf32>,
    return
  }
  func.func @transform_0(%arg0: i32, %arg1: i32) -> (i32, i32, i32) {
    %c0_i32 = arith.constant 0 : i32
    %c0_i32_0 = arith.constant 0 : i32
    return %arg0, %c0_i32, %arg1 : i32, i32, i32
  }
  func.func @transform_1(%arg0: i32, %arg1: i32) -> (i32, i32, i32) {
    %c0_i32 = arith.constant 0 : i32
    %c0_i32_0 = arith.constant 0 : i32
    return %arg0, %c0_i32, %arg1 : i32, i32, i32
  }
  func.func @transform_2(%arg0: i32, %arg1: i32) -> (i32, i32, i32) {
    %c0_i32 = arith.constant 0 : i32
    %c0_i32_0 = arith.constant 0 : i32
    return %arg0, %c0_i32, %arg1 : i32, i32, i32
  }
  func.func @transform_3(%arg0: i32, %arg1: i32) -> (i32, i32) {
    %c0_i32 = arith.constant 0 : i32
    %c0_i32_0 = arith.constant 0 : i32
    %c0_i32_1 = arith.constant 0 : i32
    return %c0_i32, %c0_i32_0 : i32, i32
  }
  func.func @transform_4(%arg0: i32, %arg1: i32) -> (i32, i32) {
    %c0_i32 = arith.constant 0 : i32
    %c0_i32_0 = arith.constant 0 : i32
    %c0_i32_1 = arith.constant 0 : i32
    return %c0_i32, %c0_i32_0 : i32, i32
  }
  func.func @transform_5(%arg0: i32, %arg1: i32) -> (i32, i32, i32) {
    %c0_i32 = arith.constant 0 : i32
    %c0_i32_0 = arith.constant 0 : i32
    return %arg0, %c0_i32, %arg1 : i32, i32, i32
  }
}

</mosaic_0001>

<llo_original>
// kernel: tpu_custom_call.1
$region0: #{tpu_custom_call.1}
  #allocation0 [shape = 'u32[]', space=smem, size = 0x4, offset = 0x4, fixed_abs, tag = 'smem constant byte address 0x4 - core index']
  #allocation1 [shape = 'u32[144,128]{1,0:T(1,128)}', space=vmem, size = 0x12000, scoped, tag = 'internal scratch']
  %s0 = inlined_call_operand.hbm [shape: f32[2,4,256], index: 0, kind: input, shape index: {}]
  %s1 = inlined_call_operand.hbm [shape: f32[2,4,256], index: 1, kind: input, shape index: {}]
  %s2 = inlined_call_operand.vmem [shape: f32[2,4,256], index: 2, kind: input, shape index: {}]
  %s3 = inlined_call_operand.hbm [shape: f32[8,12], index: 3, kind: input, shape index: {}]
  %s4 = inlined_call_operand.vmem [shape: f32[8,1], index: 4, kind: input, shape index: {}]
  %s5 = inlined_call_operand.hbm [shape: f32[2,8,256], index: 5, kind: output, shape index: {}]
  %s6 = sld [smem:[#allocation0]]
  $region65: #{tpu_custom_call.1} parent=0
    _
  %s8 = ssub.s32 1, %s6
  %s9 = scalar_select 0, %s8, %s6
  $region1: #{tpu_custom_call.1} parent=0
    #allocation2 [shape = 'u8[8192]{0}', space=vmem, size = 0x2000, scoped, tag = 'input window, operand 0']
    #allocation3 [shape = 's32[2]{0}', space=sflag, size = 0x8, scoped, tag = 'scoped memory for tpu_custom_call.1']
    #allocation4 [shape = 's32[2]{0}', space=sflag, size = 0x8, scoped, tag = 'scoped memory for tpu_custom_call.1']
    #allocation5 [shape = 'u8[8192]{0}', space=vmem, size = 0x2000, scoped, tag = 'input window, operand 1']
    #allocation6 [shape = 's32[2]{0}', space=sflag, size = 0x8, scoped, tag = 'scoped memory for tpu_custom_call.1']
    #allocation7 [shape = 'u8[4096]{0}', space=vmem, size = 0x1000, scoped, tag = 'input window, operand 3, single buffered']
    #allocation8 [shape = 'u8[16384]{0}', space=vmem, size = 0x4000, scoped, tag = 'output window, operand 0']
    %10 = vsyncpa [#allocation3], 0
    %s11 = scalar_lea.sflag [#allocation3], 1
    %12 = vsyncpa %s11, 0
    %13 = vsyncpa [#allocation6], 0
    %s14 = scalar_lea.sflag [#allocation6], 1
    %15 = vsyncpa %s14, 0
    %16 = vsyncpa [#allocation4], 0
    %s17 = scalar_lea.sflag [#allocation4], 1
    %18 = vsyncpa %s17, 0
    loop: start=0, step=1, limit=4
    $region2: #{tpu_custom_call.1} parent=1 // loop_pre_header
      _
    $region3: #{tpu_custom_call.1} parent=1 // loop_header
      %s20 = sphi 0, %s24
      %p21 = scmp.ge.s32.totalorder %s20, 4
      %s27 = sphi 0, %s39
      %s28 = sphi 0, %s35
      %s29 = sphi 0, %s27
      %s30 = sphi 0, %s28
      %s31 = sphi 0, %s29
      %s32 = sphi 0, %s30
      %s44 = sphi 0, %s46
      %s47 = sphi 0, %s44
      %s48 = sphi 0, %s47
      %s64 = sphi 0, %s48
      %s72 = sphi 0, %s74
      %s75 = sphi 0, %s72
      %s76 = sphi 0, %s75
      %s92 = sphi 0, %s76
      %s100 = sphi 0, %s102
      %s103 = sphi 0, %s100
      %s104 = sphi 0, %s103
      %s120 = sphi 0, %s104
      %s124 = sphi 0, %s124
      %s126 = sphi 0, %s124
      %s127 = sphi 0, %s126
      %s141 = sphi 0, %s127
      %s145 = sphi 0, %s145
      %s147 = sphi 0, %s145
      %s148 = sphi 0, %s147
      %s162 = sphi 0, %s148
      %s170 = sphi 0, %s172
      %s173 = sphi 0, %s170
      %s174 = sphi 0, %s173
      %s190 = sphi 0, %s174
    $region4: #{tpu_custom_call.1} parent=1 // loop_header_branch
      %23 = sbr.rel (%p21) target = $region8
    $region5: #{tpu_custom_call.1} parent=1 // loop_body
      %s25 = ssub.s32 %s20, 1
      %s26 = ssub.s32 %s20, 2
      %s33 = sadd.s32 1, %s28
      %p34 = scmp.ge.s32.totalorder %s33, 1
      %s35 = scalar_select %p34, 0, %s33
      %s36 = sadd.s32 1, %s27
      %s37 = scalar_select %p34, %s36, %s27
      %p38 = scmp.ge.s32.totalorder %s37, 2
      %s39 = scalar_select %p38, 0, %s37
      %s40 = ssub.s32 %s27, %s39
      %s41 = ssub.s32 %s28, %s35
      %s42 = sor.u32 %s40, %s41
      %p43 = scmp.eq.s32.totalorder %s42, 0
      %s45 = sadd.s32 %s44, 1
      %s46 = scalar_select %p43, %s44, %s45
      %p49 = pneg %p43
      %p50 = scmp.eq.s32.totalorder %s20, 1
      %p51 = por %p49, %p50
      %p52 = scmp.ne.s32.totalorder %s44, %s47
      %p53 = scmp.eq.s32.totalorder %s20, 0
      %p54 = por %p52, %p53
      %p55 = scmp.ne.s32.totalorder %s44, %s47
      %p56 = scmp.eq.s32.totalorder %s25, 1
      %p57 = por %p55, %p56
      %p58 = scmp.ne.s32.totalorder %s47, %s48
      %p59 = scmp.eq.s32.totalorder %s25, 0
      %p60 = por %p58, %p59
      %p61 = scmp.ne.s32.totalorder %s47, %s48
      %p62 = scmp.eq.s32.totalorder %s26, 1
      %p63 = por %p61, %p62
      %p65 = scmp.ne.s32.totalorder %s48, %s64
      %p66 = scmp.eq.s32.totalorder %s26, 0
      %p67 = por %p65, %p66
      %s68 = ssub.s32 %s27, %s39
      %s69 = ssub.s32 %s28, %s35
      %s70 = sor.u32 %s68, %s69
      %p71 = scmp.eq.s32.totalorder %s70, 0
      %s73 = sadd.s32 %s72, 1
      %s74 = scalar_select %p71, %s72, %s73
      %p77 = pneg %p71
      %p78 = scmp.eq.s32.totalorder %s20, 1
      %p79 = por %p77, %p78
      %p80 = scmp.ne.s32.totalorder %s72, %s75
      %p81 = scmp.eq.s32.totalorder %s20, 0
      %p82 = por %p80, %p81
      %p83 = scmp.ne.s32.totalorder %s72, %s75
      %p84 = scmp.eq.s32.totalorder %s25, 1
      %p85 = por %p83, %p84
      %p86 = scmp.ne.s32.totalorder %s75, %s76
      %p87 = scmp.eq.s32.totalorder %s25, 0
      %p88 = por %p86, %p87
      %p89 = scmp.ne.s32.totalorder %s75, %s76
      %p90 = scmp.eq.s32.totalorder %s26, 1
      %p91 = por %p89, %p90
      %p93 = scmp.ne.s32.totalorder %s76, %s92
      %p94 = scmp.eq.s32.totalorder %s26, 0
      %p95 = por %p93, %p94
      %s96 = ssub.s32 %s27, %s39
      %s97 = ssub.s32 %s28, %s35
      %s98 = sor.u32 %s96, %s97
      %p99 = scmp.eq.s32.totalorder %s98, 0
      %s101 = sadd.s32 %s100, 1
      %s102 = scalar_select %p99, %s100, %s101
      %p105 = pneg %p99
      %p106 = scmp.eq.s32.totalorder %s20, 1
      %p107 = por %p105, %p106
      %p108 = scmp.ne.s32.totalorder %s100, %s103
      %p109 = scmp.eq.s32.totalorder %s20, 0
      %p110 = por %p108, %p109
      %p111 = scmp.ne.s32.totalorder %s100, %s103
      %p112 = scmp.eq.s32.totalorder %s25, 1
      %p113 = por %p111, %p112
      %p114 = scmp.ne.s32.totalorder %s103, %s104
      %p115 = scmp.eq.s32.totalorder %s25, 0
      %p116 = por %p114, %p115
      %p117 = scmp.ne.s32.totalorder %s103, %s104
      %p118 = scmp.eq.s32.totalorder %s26, 1
      %p119 = por %p117, %p118
      %p121 = scmp.ne.s32.totalorder %s104, %s120
      %p122 = scmp.eq.s32.totalorder %s26, 0
      %p123 = por %p121, %p122
      %s125 = sadd.s32 %s124, 1
      %p128 = scmp.eq.s32.totalorder %s20, 1
      %p129 = scmp.ne.s32.totalorder %s124, %s126
      %p130 = scmp.eq.s32.totalorder %s20, 0
      %p131 = por %p129, %p130
      %p132 = scmp.ne.s32.totalorder %s124, %s126
      %p133 = scmp.eq.s32.totalorder %s25, 1
      %p134 = por %p132, %p133
      %p135 = scmp.ne.s32.totalorder %s126, %s127
      %p136 = scmp.eq.s32.totalorder %s25, 0
      %p137 = por %p135, %p136
      %p138 = scmp.ne.s32.totalorder %s126, %s127
      %p139 = scmp.eq.s32.totalorder %s26, 1
      %p140 = por %p138, %p139
      %p142 = scmp.ne.s32.totalorder %s127, %s141
      %p143 = scmp.eq.s32.totalorder %s26, 0
      %p144 = por %p142, %p143
      %s146 = sadd.s32 %s145, 1
      %p149 = scmp.eq.s32.totalorder %s20, 1
      %p150 = scmp.ne.s32.totalorder %s145, %s147
      %p151 = scmp.eq.s32.totalorder %s20, 0
      %p152 = por %p150, %p151
      %p153 = scmp.ne.s32.totalorder %s145, %s147
      %p154 = scmp.eq.s32.totalorder %s25, 1
      %p155 = por %p153, %p154
      %p156 = scmp.ne.s32.totalorder %s147, %s148
      %p157 = scmp.eq.s32.totalorder %s25, 0
      %p158 = por %p156, %p157
      %p159 = scmp.ne.s32.totalorder %s147, %s148
      %p160 = scmp.eq.s32.totalorder %s26, 1
      %p161 = por %p159, %p160
      %p163 = scmp.ne.s32.totalorder %s148, %s162
      %p164 = scmp.eq.s32.totalorder %s26, 0
      %p165 = por %p163, %p164
      %s166 = ssub.s32 %s27, %s39
      %s167 = ssub.s32 %s28, %s35
      %s168 = sor.u32 %s166, %s167
      %p169 = scmp.eq.s32.totalorder %s168, 0
      %s171 = sadd.s32 %s170, 1
      %s172 = scalar_select %p169, %s170, %s171
      %p175 = pneg %p169
      %p176 = scmp.eq.s32.totalorder %s20, 1
      %p177 = por %p175, %p176
      %p178 = scmp.ne.s32.totalorder %s170, %s173
      %p179 = scmp.eq.s32.totalorder %s20, 0
      %p180 = por %p178, %p179
      %p181 = scmp.ne.s32.totalorder %s170, %s173
      %p182 = scmp.eq.s32.totalorder %s25, 1
      %p183 = por %p181, %p182
      %p184 = scmp.ne.s32.totalorder %s173, %s174
      %p185 = scmp.eq.s32.totalorder %s25, 0
      %p186 = por %p184, %p185
      %p187 = scmp.ne.s32.totalorder %s173, %s174
      %p188 = scmp.eq.s32.totalorder %s26, 1
      %p189 = por %p187, %p188
      %p191 = scmp.ne.s32.totalorder %s174, %s190
      %p192 = scmp.eq.s32.totalorder %s26, 0
      %p193 = por %p191, %p192
      %p194 = scmp.le.s32.totalorder 1, %s20
      %p195 = scmp.lt.s32.totalorder %s20, 3
      %p196 = pnand %p194, %p195
      %p197 = pneg %p196
      // Predicated region
      $region9: #{tpu_custom_call.1} parent=5 // pred_check
        _
      $region10: #{tpu_custom_call.1} parent=5 // pred_check_branch
        %199 = sbr.rel (%p196) target = $region12
      $region11: #{tpu_custom_call.1} parent=5 // pred_region
        %s200 = ssub.s32 %s20, 1
        // Predicated region
        $region13: #{tpu_custom_call.1} parent=11 // pred_check
          %p201 = pneg %p137
        $region14: #{tpu_custom_call.1} parent=11 // pred_check_branch
          %203 = sbr.rel (%p201) target = $region16
        $region15: #{tpu_custom_call.1} parent=11 // pred_region
          %s205 = ssub.s32 128, 128
          %206 = vsyncadd [#allocation6], %s205
          %s208 = sshll.u32 [#allocation7], 4
          %s209 = int_to_ptr.vmem [resolvable:$true] %s208
          %211 = dma.hbm_to_vmem [thread:$0]  %s3, 128, %s209, [#allocation6]
        $region16: #{tpu_custom_call.1} parent=11 // pred_fallthru
          _
        // Predicated region
        $region17: #{tpu_custom_call.1} parent=11 // pred_check
          %p212 = pneg %p158
        $region18: #{tpu_custom_call.1} parent=11 // pred_check_branch
          %214 = sbr.rel (%p212) target = $region20
        $region19: #{tpu_custom_call.1} parent=11 // pred_region
          _
        $region20: #{tpu_custom_call.1} parent=11 // pred_fallthru
          _
      $region12: #{tpu_custom_call.1} parent=5 // pred_fallthru
        _
      %p215 = scmp.lt.s32.totalorder %s20, 2
      // Predicated region
      $region21: #{tpu_custom_call.1} parent=5 // pred_check
        %p216 = pneg %p215
      $region22: #{tpu_custom_call.1} parent=5 // pred_check_branch
        %218 = sbr.rel (%p216) target = $region24
      $region23: #{tpu_custom_call.1} parent=5 // pred_region
        // Predicated region
        $region25: #{tpu_custom_call.1} parent=23 // pred_check
          %p219 = pneg %p54
        $region26: #{tpu_custom_call.1} parent=23 // pred_check_branch
          %221 = sbr.rel (%p219) target = $region28
        $region27: #{tpu_custom_call.1} parent=23 // pred_region
          %s222 = sand.u32 %s44, 1
          %s223 = scalar_lea.sflag [#allocation3], %s222
          %s224 = sand.u32 %s44, 1
          %s225 = smul.addr %s224, 8
          %s226 = scalar_lea.vmem [#allocation2], %s225
          %s227 = smul.u32 2, %s28
          %s229 = ssub.s32 128, 128
          %230 = vsyncadd %s223, %s229
          %s231 = smul.addr %s27, 2
          %s232 = sadd.s32 %s227, %s231
          %s233 = smul.addr %s232, 64
          %s234 = scalar_lea.hbm %s0, %s233
          %s236 = sshll.u32 %s226, 4
          %s237 = int_to_ptr.vmem [resolvable:$true] %s236
          %239 = dma.hbm_to_vmem [thread:$0]  %s234, 128, %s237, %s223
        $region28: #{tpu_custom_call.1} parent=23 // pred_fallthru
          _
        // Predicated region
        $region29: #{tpu_custom_call.1} parent=23 // pred_check
          %p240 = pneg %p82
        $region30: #{tpu_custom_call.1} parent=23 // pred_check_branch
          %242 = sbr.rel (%p240) target = $region32
        $region31: #{tpu_custom_call.1} parent=23 // pred_region
          %s243 = sand.u32 %s20, 1
          %s244 = scalar_lea.sflag [#allocation6], %s243
          %s245 = sand.u32 %s72, 1
          %s246 = smul.addr %s245, 8
          %s247 = scalar_lea.vmem [#allocation5], %s246
          %s248 = smul.u32 2, %s28
          %s250 = ssub.s32 128, 128
          %251 = vsyncadd %s244, %s250
          %s252 = smul.addr %s27, 2
          %s253 = sadd.s32 %s248, %s252
          %s254 = smul.addr %s253, 64
          %s255 = scalar_lea.hbm %s1, %s254
          %s257 = sshll.u32 %s247, 4
          %s258 = int_to_ptr.vmem [resolvable:$true] %s257
          %260 = dma.hbm_to_vmem [thread:$0]  %s255, 128, %s258, %s244
        $region32: #{tpu_custom_call.1} parent=23 // pred_fallthru
          _
        // Predicated region
        $region33: #{tpu_custom_call.1} parent=23 // pred_check
          %p261 = pneg %p110
        $region34: #{tpu_custom_call.1} parent=23 // pred_check_branch
          %263 = sbr.rel (%p261) target = $region36
        $region35: #{tpu_custom_call.1} parent=23 // pred_region
          %s264 = smul.u32 2, %s28
          %p265 = scmp.lt.s32.totalorder %s27, 1
          %s266 = scalar_select %p265, %s27, 1
          %p267 = scmp.lt.s32.totalorder %s264, 1
          %s268 = scalar_select %p267, %s264, 1
          %s269 = smul.addr %s266, 2
          %s270 = sadd.s32 %s268, %s269
          %s271 = smul.addr %s270, 4
          %s272 = scalar_lea.vmem %s2, %s271
          %s273 = smul.u32 2, %s28
        $region36: #{tpu_custom_call.1} parent=23 // pred_fallthru
          _
      $region24: #{tpu_custom_call.1} parent=5 // pred_fallthru
        _
      %p274 = scmp.le.s32.totalorder 1, %s20
      %p275 = scmp.lt.s32.totalorder %s20, 3
      %p276 = pnand %p274, %p275
      %p277 = pneg %p276
      // Predicated region
      $region37: #{tpu_custom_call.1} parent=5 // pred_check
        _
      $region38: #{tpu_custom_call.1} parent=5 // pred_check_branch
        %279 = sbr.rel (%p276) target = $region40
      $region39: #{tpu_custom_call.1} parent=5 // pred_region
        %s280 = ssub.s32 %s20, 1
        %s281 = sand.u32 %s47, 1
        %s282 = scalar_lea.sflag [#allocation3], %s281
        %s283 = sand.u32 %s47, 1
        %s284 = smul.addr %s283, 8
        %s285 = scalar_lea.vmem [#allocation2], %s284
        // Predicated region
        $region41: #{tpu_custom_call.1} parent=39 // pred_check
          %p286 = pneg %p60
        $region42: #{tpu_custom_call.1} parent=39 // pred_check_branch
          %288 = sbr.rel (%p286) target = $region44
        $region43: #{tpu_custom_call.1} parent=39 // pred_region
          %289 = dma.done %s282, 128
        $region44: #{tpu_custom_call.1} parent=39 // pred_fallthru
          _
        %s290 = sand.u32 %s25, 1
        %s291 = scalar_lea.sflag [#allocation6], %s290
        %s292 = sand.u32 %s75, 1
        %s293 = smul.addr %s292, 8
        %s294 = scalar_lea.vmem [#allocation5], %s293
        // Predicated region
        $region45: #{tpu_custom_call.1} parent=39 // pred_check
          %p295 = pneg %p88
        $region46: #{tpu_custom_call.1} parent=39 // pred_check_branch
          %297 = sbr.rel (%p295) target = $region48
        $region47: #{tpu_custom_call.1} parent=39 // pred_region
          %298 = dma.done %s291, 128
        $region48: #{tpu_custom_call.1} parent=39 // pred_fallthru
          _
        // Predicated region
        $region49: #{tpu_custom_call.1} parent=39 // pred_check
          %p299 = pneg %p137
        $region50: #{tpu_custom_call.1} parent=39 // pred_check_branch
          %301 = sbr.rel (%p299) target = $region52
        $region51: #{tpu_custom_call.1} parent=39 // pred_region
          %302 = dma.done [#allocation6], 128
        $region52: #{tpu_custom_call.1} parent=39 // pred_fallthru
          _
        %s303 = sand.u32 %s47, 1
        %s304 = scalar_lea.sflag [#allocation3], %s303
        %s305 = sand.u32 %s47, 1
        %s306 = smul.addr %s305, 8
        %s307 = scalar_lea.vmem [#allocation2], %s306
        %p308 = pneg %p60
        %p309 = pneg %p57
        %s310 = sand.u32 %s25, 1
        %s311 = scalar_lea.sflag [#allocation6], %s310
        %s312 = sand.u32 %s75, 1
        %s313 = smul.addr %s312, 8
        %s314 = scalar_lea.vmem [#allocation5], %s313
        %p315 = pneg %p88
        %p316 = pneg %p85
        %s317 = smul.u32 2, %s30
        %p318 = scmp.lt.s32.totalorder %s29, 1
        %s319 = scalar_select %p318, %s29, 1
        %p320 = scmp.lt.s32.totalorder %s317, 1
        %s321 = scalar_select %p320, %s317, 1
        %s322 = smul.addr %s319, 2
        %s323 = sadd.s32 %s321, %s322
        %s324 = smul.addr %s323, 4
        %s325 = scalar_lea.vmem %s2, %s324
        %p326 = pneg %p116
        %p327 = pneg %p113
        %p328 = pneg %p137
        %p329 = pneg %p134
        %p330 = pneg %p158
        %p331 = pneg %p155
        %p332 = pneg %p186
        %p333 = pneg %p183
        %s334 = sand.u32 %s173, 1
        %s335 = scalar_lea.sflag [#allocation4], %s334
        %s336 = sand.u32 %s173, 1
        %s337 = smul.addr %s336, 16
        %s338 = scalar_lea.vmem [#allocation8], %s337
        %s339 = smul.u32 2, %s30
        %s340 = smul.u32 2, %s30
        %s341 = smul.u32 2, %s30
        %p342 = scmp.lt.s32.totalorder %s29, 1
        %s343 = scalar_select %p342, %s29, 1
        %p344 = scmp.lt.s32.totalorder %s341, 1
        %s345 = scalar_select %p344, %s341, 1
        %s346 = smul.addr %s343, 2
        %s347 = sadd.s32 %s345, %s346
        %s348 = smul.addr %s347, 4
        %s349 = scalar_lea.vmem %s2, %s348
        %s350 = smul.u32 2, %s30
        %s351 = smul.u32 2, %s30
        %v352 = vld [vmem:[%s285] sm:$0xff]
        %v353 = vld [vmem:[%s294] sm:$0xff]
        %v354 = vld [vmem:[%s349] sm:$0xff]
        %v356 = vcombine.high %v352, %v352
        %v359 = vcombine.low %v353, %v353
        %v362 = vcombine.high %v354, %v354
        %vm363 = vcmask 1043456
        %v364 = vsel %vm363, %v352, %v359
        %v365 = vsel %vm363, %v356, %v353
        %v366 = vld [vmem:[#allocation7] sm:$0xff]
        %v367 = vld [vmem:[%s4] sm:$0xff]
        %369 = vset.pattern.permute.xlu0 0
        %370 = vperm.xlu0 %369, %v367
        %v371 = vpop.permute.xlu0 %370
        %vm373 = vcmask 97280
        %v375 = vsel %vm373, %v366, 0
        %v377 = vsel %vm363, %v354, 0
        %v379 = vsel %vm363, %v362, 0
        %381 = vmatprep.subr.mxu0 %v365
        %382 = vmatpush1.msra.mxu0 %v364
        %383 = vmatprep.subr.mxu0 %v379
        %384 = vmatpush1.msra.mxu0 %v377
        %385 = vmatprep.subr.mxu0 0.0
        %386 = vmatpush1.msra.mxu0 0.0
        %387 = vmatprep.subr.mxu0 0.0
        %388 = vmatpush1.msra.mxu0 0.0
        %389 = vmatprep.subr.mxu0 0.0
        %390 = vmatpush1.msra.mxu0 0.0
        %391 = vmatprep.subr.mxu0 0.0
        %392 = vmatpush1.msra.mxu0 0.0
        %393 = vmatprep.subr.mxu0 0.0
        %394 = vmatpush1.msra.mxu0 0.0
        %395 = vmatprep.subr.mxu0 0.0
        %396 = vmatpush1.msra.mxu0 0.0
        %397 = vmatprep.subr.mxu0 0.0
        %398 = vmatpush1.msra.mxu0 0.0
        %399 = vmatprep.subr.mxu0 0.0
        %400 = vmatpush1.msra.mxu0 0.0
        %401 = vmatprep.subr.mxu0 0.0
        %402 = vmatpush1.msra.mxu0 0.0
        %403 = vmatprep.subr.mxu0 0.0
        %404 = vmatpush1.msra.mxu0 0.0
        %405 = vmatprep.subr.mxu0 0.0
        %406 = vmatpush1.msra.mxu0 0.0
        %407 = vmatprep.subr.mxu0 0.0
        %408 = vmatpush1.msra.mxu0 0.0
        %409 = vmatprep.subr.mxu0 0.0
        %410 = vmatpush1.msra.mxu0 0.0
        %411 = vmatprep.subr.mxu0 0.0
        %412 = vmatpush1.msra.mxu0 0.0
        %413 = vmatprep.subr.mxu0 0.0
        %414 = vmatpush1.msra.mxu0 0.0
        %415 = vmatprep.subr.mxu0 0.0
        %416 = vmatpush1.msra.mxu0 0.0
        %417 = vmatprep.subr.mxu0 0.0
        %418 = vmatpush1.msra.mxu0 0.0
        %419 = vmatprep.subr.mxu0 0.0
        %420 = vmatpush1.msra.mxu0 0.0
        %421 = vmatprep.subr.mxu0 0.0
        %422 = vmatpush1.msra.mxu0 0.0
        %423 = vmatprep.subr.mxu0 0.0
        %424 = vmatpush1.msra.mxu0 0.0
        %425 = vmatprep.subr.mxu0 0.0
        %426 = vmatpush1.msra.mxu0 0.0
        %427 = vmatprep.subr.mxu0 0.0
        %428 = vmatpush1.msra.mxu0 0.0
        %429 = vmatprep.subr.mxu0 0.0
        %430 = vmatpush1.msra.mxu0 0.0
        %431 = vmatprep.subr.mxu0 0.0
        %432 = vmatpush1.msra.mxu0 0.0
        %433 = vmatprep.subr.mxu0 0.0
        %434 = vmatpush1.msra.mxu0 0.0
        %435 = vmatprep.subr.mxu0 0.0
        %436 = vmatpush1.msra.mxu0 0.0
        %437 = vmatprep.subr.mxu0 0.0
        %438 = vmatpush1.msra.mxu0 0.0
        %439 = vmatprep.subr.mxu0 0.0
        %440 = vmatpush1.msra.mxu0 0.0
        %441 = vmatprep.subr.mxu0 0.0
        %442 = vmatpush1.msra.mxu0 0.0
        %443 = vmatprep.subr.mxu0 0.0
        %444 = vmatpush1.msra.mxu0 0.0
        %445 = vmatprep.mubr.f32.mxu0 0.0
        %446 = vmatmul.mubr.f32.gmra.mrb[0].mxu0 %v375
        %v447 = vpop.f32.mrb[0].mxu0
        %v448 = vadd.f32 %v371, %v447
        %v449 = vpop.f32.mrb[0].mxu0
        %v450 = vadd.f32 %v371, %v449
        %451 = vdwg.mxu0
        %v452 = vmax.f32 %v448, 0.0
        %v453 = vmax.f32 %v450, 0.0
        %454 = vst [vmem:[%s338] sm:$0xff] %v452
        %455 = vst [vmem:[%s338 + $0x8] sm:$0xff] %v453
        %s456 = sand.u32 %s173, 1
        %s457 = scalar_lea.sflag [#allocation4], %s456
        %s458 = sand.u32 %s173, 1
        %s459 = smul.addr %s458, 16
        %s460 = scalar_lea.vmem [#allocation8], %s459
        // Predicated region
        $region53: #{tpu_custom_call.1} parent=39 // pred_check
          %p461 = pneg %p183
        $region54: #{tpu_custom_call.1} parent=39 // pred_check_branch
          %463 = sbr.rel (%p461) target = $region56
        $region55: #{tpu_custom_call.1} parent=39 // pred_region
          %s464 = smul.u32 2, %s30
          %s466 = ssub.s32 256, 256
          %467 = vsyncadd %s457, %s466
          %s468 = smul.addr %s29, 2
          %s469 = sadd.s32 %s464, %s468
          %s470 = smul.addr %s469, 128
          %s471 = scalar_lea.hbm %s5, %s470
          %s473 = sshll.u32 %s460, 4
          %s474 = int_to_ptr.vmem [resolvable:$true] %s473
          %476 = dma.vmem_to_hbm [thread:$0]  %s474, 256, %s471, %s457
        $region56: #{tpu_custom_call.1} parent=39 // pred_fallthru
          _
      $region40: #{tpu_custom_call.1} parent=5 // pred_fallthru
        _
      %p477 = scmp.le.s32.totalorder 2, %s20
      // Predicated region
      $region57: #{tpu_custom_call.1} parent=5 // pred_check
        %p478 = pneg %p477
      $region58: #{tpu_custom_call.1} parent=5 // pred_check_branch
        %480 = sbr.rel (%p478) target = $region60
      $region59: #{tpu_custom_call.1} parent=5 // pred_region
        %s481 = ssub.s32 %s20, 2
        // Predicated region
        $region61: #{tpu_custom_call.1} parent=59 // pred_check
          %p482 = pneg %p189
        $region62: #{tpu_custom_call.1} parent=59 // pred_check_branch
          %484 = sbr.rel (%p482) target = $region64
        $region63: #{tpu_custom_call.1} parent=59 // pred_region
          %s485 = sand.u32 %s174, 1
          %s486 = scalar_lea.sflag [#allocation4], %s485
          %s487 = sand.u32 %s174, 1
          %s488 = smul.addr %s487, 16
          %s489 = scalar_lea.vmem [#allocation8], %s488
          %490 = dma.done %s486, 256
        $region64: #{tpu_custom_call.1} parent=59 // pred_fallthru
          _
      $region60: #{tpu_custom_call.1} parent=5 // pred_fallthru
        _
    $region6: #{tpu_custom_call.1} parent=1 // loop_footer
      %s24 = sadd.s32 1, %s20
    $region7: #{tpu_custom_call.1} parent=1 // loop_footer_branch
      %19 = sbr.rel target = $region3
    $region8: #{tpu_custom_call.1} parent=1 // loop_exit
      _
    %491 = vsyncpa [#allocation3], 1
    %s492 = scalar_lea.sflag [#allocation3], 1
    %493 = vsyncpa %s492, 1
    %494 = vsyncpa [#allocation6], 1
    %s495 = scalar_lea.sflag [#allocation6], 1
    %496 = vsyncpa %s495, 1
    %497 = vsyncpa [#allocation4], 1
    %s498 = scalar_lea.sflag [#allocation4], 1
    %499 = vsyncpa %s498, 1

</llo_original>
